<compile_context>
chip_gen: v6e
topology: v6e:2x2x1
jax: 0.10.0
libtpu: 0.0.40
codegen_flags: <defaults>
</compile_context>

<pallas_src>
import functools
import math

import jax
import jax.numpy as jnp
from jax import lax
from jax.experimental import pallas as pl
from jax.experimental.pallas import tpu as pltpu

LN_EPS = 1e-5          # torch.nn.LayerNorm default
DROPOUT_P = 0.75       # module default


def _linear_relu_ln(x_ref, w_ref, b_ref, g_ref, beta_ref, dot_dtype):
    x = x_ref[...]
    w = w_ref[...]
    if dot_dtype is not None:
        # bf16 operands for the MXU fast path on v6e/v7x; accumulate stays f32.
        x = x.astype(dot_dtype)
        w = w.astype(dot_dtype)
    # Linear: (tb, F_in) @ (F_in, F_out) + bias -> MXU matmul, f32 accumulate.
    h = jnp.dot(x, w, preferred_element_type=jnp.float32)
    h = h + b_ref[...]                         # bias broadcast over rows
    # ReLU
    h = jnp.maximum(h, 0.0)
    # LayerNorm over the feature (lane) axis -- f32 throughout.
    mean = jnp.mean(h, axis=-1, keepdims=True)
    var = jnp.mean((h - mean) * (h - mean), axis=-1, keepdims=True)
    h = (h - mean) * lax.rsqrt(var + LN_EPS)
    return h * g_ref[...] + beta_ref[...]


def mlp_block_eval_kernel(x_ref, w_ref, b_ref, g_ref, beta_ref, o_ref, *, dot_dtype):
    h = _linear_relu_ln(x_ref, w_ref, b_ref, g_ref, beta_ref, dot_dtype)
    o_ref[...] = h.astype(o_ref.dtype)


def mlp_block_train_kernel(x_ref, w_ref, b_ref, g_ref, beta_ref, u_ref, o_ref,
                           *, dot_dtype, dropout_p):
    h = _linear_relu_ln(x_ref, w_ref, b_ref, g_ref, beta_ref, dot_dtype)
    # Inverted dropout fused in-kernel; u_ref holds host-generated U(0,1) values.
    keep_prob = 1.0 - dropout_p
    keep = u_ref[...] < keep_prob
    h = jnp.where(keep, h * (1.0 / keep_prob), 0.0)
    o_ref[...] = h.astype(o_ref.dtype)


def mlp_block_forward(x, w, b, gamma, beta, *, training=False, rng=None,
                      dropout_p=DROPOUT_P, tb=None, dot_dtype=None):
    """x: (B, F_in) f32; w: (F_in, F_out); b/gamma/beta: (F_out,)."""
    B, F_in = x.shape
    F_out = w.shape[1]

    # Large batch tile: whole batch for small problems, capped so double-buffered
    # activation tiles + the resident weight stay comfortably inside VMEM.
    if tb is None:
        tb = B if B <= 512 else 512
    assert B % tb == 0, "batch must be divisible by the batch tile"
    grid = (B // tb,)

    b2 = b.reshape(1, F_out)
    g2 = gamma.reshape(1, F_out)
    bt2 = beta.reshape(1, F_out)

    in_specs = [
        pl.BlockSpec((tb, F_in), lambda i: (i, 0)),        # x tile
        pl.BlockSpec((F_in, F_out), lambda i: (0, 0)),     # W (resident)
        pl.BlockSpec((1, F_out), lambda i: (0, 0)),        # bias
        pl.BlockSpec((1, F_out), lambda i: (0, 0)),        # LN gamma
        pl.BlockSpec((1, F_out), lambda i: (0, 0)),        # LN beta
    ]
    inputs = [x, w, b2, g2, bt2]
    bytes_accessed = 4 * (B * F_in + F_in * F_out + 3 * F_out + B * F_out)

    if training:
        if rng is None:
            rng = jax.random.PRNGKey(0)
        # TODO(synk): on real TPU the hardware PRNG (pltpu.prng_*) would avoid this
        # extra DMA, but it has no CPU/interpret lowering, so use a host-side mask.
        u = jax.random.uniform(rng, (B, F_out), dtype=jnp.float32)
        in_specs.append(pl.BlockSpec((tb, F_out), lambda i: (i, 0)))
        inputs.append(u)
        bytes_accessed += 4 * B * F_out
        kernel = functools.partial(mlp_block_train_kernel,
                                   dot_dtype=dot_dtype, dropout_p=dropout_p)
    else:
        kernel = functools.partial(mlp_block_eval_kernel, dot_dtype=dot_dtype)

    # VMEM budget: double-buffered activation tiles + resident weight, with 2x
    # headroom, clamped to stay under v7x's 64 MiB physical VMEM.
    n_act_tiles = 3 if training else 2        # x, out (+ dropout uniforms)
    tile_bytes = 2 * n_act_tiles * tb * max(F_in, F_out) * 4
    w_bytes = 2 * F_in * F_out * 4
    vmem_limit = int(min(max(2 * (tile_bytes + w_bytes), 8 << 20), 48 << 20))

    cost = pl.CostEstimate(
        flops=2 * B * F_in * F_out + 10 * B * F_out,
        transcendentals=B,                     # one rsqrt per row
        bytes_accessed=bytes_accessed)

    return pl.pallas_call(
        kernel,
        out_shape=jax.ShapeDtypeStruct((B, F_out), x.dtype),
        grid=grid,
        in_specs=in_specs,
        out_specs=pl.BlockSpec((tb, F_out), lambda i: (i, 0)),
        compiler_params=pltpu.CompilerParams(
            dimension_semantics=("parallel",),   # batch tiles are independent
            vmem_limit_bytes=vmem_limit),
        cost_estimate=cost,
    )(*inputs)


def mlp_block_reference(x, w, b, gamma, beta):
    """Pure-JAX eval-mode reference (dropout is identity in eval)."""
    h = jnp.maximum(x @ w + b, 0.0)
    mean = jnp.mean(h, axis=-1, keepdims=True)
    var = jnp.mean((h - mean) ** 2, axis=-1, keepdims=True)
    h = (h - mean) / jnp.sqrt(var + LN_EPS)
    return h * gamma + beta


if __name__ == "__main__":
    # Shapes consistent with MLPBlock(in_features=64, out_features=128), batch 32.
    B, F_in, F_out = 32, 64, 128

    key = jax.random.PRNGKey(0)
    kx, kw, kb, kd = jax.random.split(key, 4)

    x = jax.random.normal(kx, (B, F_in), dtype=jnp.float32)

    # Parameter init mimicking torch.nn.Linear defaults: U(-1/sqrt(fan_in), ...).
    bound = 1.0 / math.sqrt(F_in)
    w = jax.random.uniform(kw, (F_in, F_out), jnp.float32, -bound, bound)
    b = jax.random.uniform(kb, (F_out,), jnp.float32, -bound, bound)
    # torch.nn.LayerNorm defaults: weight=1, bias=0.
    gamma = jnp.ones((F_out,), jnp.float32)
    beta = jnp.zeros((F_out,), jnp.float32)

    # Eval-mode forward (nn.Dropout is identity in eval): check against reference.
    out_eval = jax.block_until_ready(
        mlp_block_forward(x, w, b, gamma, beta, training=False))
    ref = mlp_block_reference(x, w, b, gamma, beta)
    assert out_eval.shape == (B, F_out)
    assert jnp.allclose(out_eval, ref, atol=2e-2, rtol=2e-2), "eval mismatch vs reference"

    # bf16 matmul operands (v6e/v7x MXU fast path), f32 accumulate + epilogue.
    out_bf16 = jax.block_until_ready(
        mlp_block_forward(x, w, b, gamma, beta, training=False,
                          dot_dtype=jnp.bfloat16))
    assert jnp.allclose(out_bf16, ref, atol=1e-1, rtol=1e-1), "bf16 path mismatch"

    # Training-mode forward exercising fused dropout (p=0.75, inverted scaling).
    out_train = jax.block_until_ready(
        mlp_block_forward(x, w, b, gamma, beta, training=True, rng=kd))
    assert out_train.shape == (B, F_out)
    zero_frac = float(jnp.mean(out_train == 0.0))
    assert 0.55 < zero_frac < 0.92, f"unexpected dropout zero fraction {zero_frac}"

    print("KERNEL_OK")
</pallas_src>

<mosaic_0001>
module attributes {stable_mosaic.version = 11 : i64} {
  func.func @mlp_block_eval_kernel(%arg0: i32, %arg1: memref<32x64xf32, #tpu.memory_space<vmem>>, %arg2: memref<64x128xf32, #tpu.memory_space<vmem>>, %arg3: memref<1x128xf32, #tpu.memory_space<vmem>>, %arg4: memref<1x128xf32, #tpu.memory_space<vmem>>, %arg5: memref<1x128xf32, #tpu.memory_space<vmem>>, %arg6: memref<32x128xf32, #tpu.memory_space<vmem>>) attributes {dimension_semantics = [#tpu.dimension_semantics<parallel>], iteration_bounds = array<i64: 1>, scalar_prefetch = 0 : i64, scratch_operands = 0 : i64, tpu.core_type = #tpu.core_type<tc>, window_params = [{transform_indices = @transform_0, window_bounds = array<i64: 32, 64>}, {pipeline_mode = #tpu.pipeline_mode<synchronous>, transform_indices = @transform_1, window_bounds = array<i64: 64, 128>}, {pipeline_mode = #tpu.pipeline_mode<synchronous>, transform_indices = @transform_2, window_bounds = array<i64: 1, 128>}, {pipeline_mode = #tpu.pipeline_mode<synchronous>, transform_indices = @transform_3, window_bounds = array<i64: 1, 128>}, {pipeline_mode = #tpu.pipeline_mode<synchronous>, transform_indices = @transform_4, window_bounds = array<i64: 1, 128>}, {transform_indices = @transform_5, window_bounds = array<i64: 32, 128>}]} {
    %c0 = arith.constant 0 : index
    %c0_0 = arith.constant 0 : index
    %0 = vector.load %arg1[%c0, %c0_0] : memref<32x64xf32, #tpu.memory_space<vmem>>, vector<32x64xf32>
    %c0_1 = arith.constant 0 : index
    %c0_2 = arith.constant 0 : index
    %1 = vector.load %arg2[%c0_1, %c0_2] : memref<64x128xf32, #tpu.memory_space<vmem>>, vector<64x128xf32>
    %cst = arith.constant dense<0.000000e+00> : vector<32x128xf32>
    %2 = tpu.matmul %0, %1, %cst {dimension_numbers = #tpu.dot_dimension_numbers<[1], [0], [0], [1], [0, 0, 1, 1], [], []>} : vector<32x64xf32>, vector<64x128xf32>, vector<32x128xf32> -> vector<32x128xf32>
    %c0_3 = arith.constant 0 : index
    %c0_4 = arith.constant 0 : index
    %3 = vector.load %arg3[%c0_3, %c0_4] : memref<1x128xf32, #tpu.memory_space<vmem>>, vector<1x128xf32>
    %4 = vector.broadcast %3 : vector<1x128xf32> to vector<32x128xf32>
    %5 = arith.addf %2, %4 : vector<32x128xf32>
    %cst_5 = arith.constant 0.000000e+00 : f32
    %6 = vector.broadcast %cst_5 : f32 to vector<32x128xf32>
    %7 = arith.maximumf %5, %6 : vector<32x128xf32>
    %cst_6 = arith.constant dense<0.000000e+00> : vector<32xf32>
    %8 = vector.multi_reduction <add>, %7, %cst_6 [1] : vector<32x128xf32> to vector<32xf32>
    %9 = vector.shape_cast %8 : vector<32xf32> to vector<32x1xf32>
    %cst_7 = arith.constant 1.280000e+02 : f32
    %10 = vector.broadcast %cst_7 : f32 to vector<32x1xf32>
    %11 = arith.divf %9, %10 : vector<32x1xf32>
    %12 = vector.broadcast %11 : vector<32x1xf32> to vector<32x128xf32>
    %13 = arith.subf %7, %12 : vector<32x128xf32>
    %14 = vector.broadcast %11 : vector<32x1xf32> to vector<32x128xf32>
    %15 = arith.subf %7, %14 : vector<32x128xf32>
    %16 = arith.mulf %13, %15 : vector<32x128xf32>
    %cst_8 = arith.constant dense<0.000000e+00> : vector<32xf32>
    %17 = vector.multi_reduction <add>, %16, %cst_8 [1] : vector<32x128xf32> to vector<32xf32>
    %18 = vector.shape_cast %17 : vector<32xf32> to vector<32x1xf32>
    %cst_9 = arith.constant 1.280000e+02 : f32
    %19 = vector.broadcast %cst_9 : f32 to vector<32x1xf32>
    %20 = arith.divf %18, %19 : vector<32x1xf32>
    %21 = vector.broadcast %11 : vector<32x1xf32> to vector<32x128xf32>
    %22 = arith.subf %7, %21 : vector<32x128xf32>
    %cst_10 = arith.constant 9.99999974E-6 : f32
    %23 = vector.broadcast %cst_10 : f32 to vector<32x1xf32>
    %24 = arith.addf %20, %23 : vector<32x1xf32>
    %25 = math.rsqrt %24 : vector<32x1xf32>
    %26 = vector.broadcast %25 : vector<32x1xf32> to vector<32x128xf32>
    %27 = arith.mulf %22, %26 : vector<32x128xf32>
    %c0_11 = arith.constant 0 : index
    %c0_12 = arith.constant 0 : index
    %28 = vector.load %arg4[%c0_11, %c0_12] : memref<1x128xf32, #tpu.memory_space<vmem>>, vector<1x128xf32>
    %29 = vector.broadcast %28 : vector<1x128xf32> to vector<32x128xf32>
    %30 = arith.mulf %27, %29 : vector<32x128xf32>
    %c0_13 = arith.constant 0 : index
    %c0_14 = arith.constant 0 : index
    %31 = vector.load %arg5[%c0_13, %c0_14] : memref<1x128xf32, #tpu.memory_space<vmem>>, vector<1x128xf32>
    %32 = vector.broadcast %31 : vector<1x128xf32> to vector<32x128xf32>
    %33 = arith.addf %30, %32 : vector<32x128xf32>
    %c0_15 = arith.constant 0 : index
    %c0_16 = arith.constant 0 : index
    %34 = vector.load %arg6[%c0_15, %c0_16] : memref<32x128xf32, #tpu.memory_space<vmem>>, vector<32x128xf32>
    tpu.vector_store %arg6[%c0_15, %c0_16], %33 {strides = array<i32>} : memref<32x128xf32, #tpu.memory_space<vmem>>, vector<32x128xf32>,
    return
  }
  func.func @transform_0(%arg0: i32) -> (i32, i32) {
    %c0_i32 = arith.constant 0 : i32
    %c0_i32_0 = arith.constant 0 : i32
    return %arg0, %c0_i32 : i32, i32
  }
  func.func @transform_1(%arg0: i32) -> (i32, i32) {
    %c0_i32 = arith.constant 0 : i32
    %c0_i32_0 = arith.constant 0 : i32
    %c0_i32_1 = arith.constant 0 : i32
    return %c0_i32, %c0_i32_0 : i32, i32
  }
  func.func @transform_2(%arg0: i32) -> (i32, i32) {
    %c0_i32 = arith.constant 0 : i32
    %c0_i32_0 = arith.constant 0 : i32
    %c0_i32_1 = arith.constant 0 : i32
    return %c0_i32, %c0_i32_0 : i32, i32
  }
  func.func @transform_3(%arg0: i32) -> (i32, i32) {
    %c0_i32 = arith.constant 0 : i32
    %c0_i32_0 = arith.constant 0 : i32
    %c0_i32_1 = arith.constant 0 : i32
    return %c0_i32, %c0_i32_0 : i32, i32
  }
  func.func @transform_4(%arg0: i32) -> (i32, i32) {
    %c0_i32 = arith.constant 0 : i32
    %c0_i32_0 = arith.constant 0 : i32
    %c0_i32_1 = arith.constant 0 : i32
    return %c0_i32, %c0_i32_0 : i32, i32
  }
  func.func @transform_5(%arg0: i32) -> (i32, i32) {
    %c0_i32 = arith.constant 0 : i32
    %c0_i32_0 = arith.constant 0 : i32
    return %arg0, %c0_i32 : i32, i32
  }
}

</mosaic_0001>

<llo_original>
// kernel: tpu_custom_call.1
$region0: #{tpu_custom_call.1}
  #allocation0 [shape = 'u32[]', space=smem, size = 0x4, offset = 0x4, fixed_abs, tag = 'smem constant byte address 0x4 - core index']
  #allocation1 [shape = 'u32[144,128]{1,0:T(1,128)}', space=vmem, size = 0x12000, scoped, tag = 'internal scratch']
  %s0 = inlined_call_operand.hbm [shape: f32[32,64], index: 0, kind: input, shape index: {}]
  %s1 = inlined_call_operand.hbm [shape: f32[64,128], index: 1, kind: input, shape index: {}]
  %s2 = inlined_call_operand.vmem [shape: f32[1,128], index: 2, kind: input, shape index: {}]
  %s3 = inlined_call_operand.vmem [shape: f32[1,128], index: 3, kind: input, shape index: {}]
  %s4 = inlined_call_operand.vmem [shape: f32[1,128], index: 4, kind: input, shape index: {}]
  %s5 = inlined_call_operand.hbm [shape: f32[32,128], index: 5, kind: output, shape index: {}]
  %s6 = sld [smem:[#allocation0]]
  $region38: #{tpu_custom_call.1} parent=0
    _
  %s8 = ssub.s32 1, %s6
  %s9 = scalar_select 0, %s8, %s6
  $region1: #{tpu_custom_call.1} parent=0
    #allocation2 [shape = 'u8[16384]{0}', space=vmem, size = 0x4000, scoped, tag = 'input window, operand 0, single buffered']
    #allocation3 [shape = 's32[1]{0}', space=sflag, size = 0x4, scoped, tag = 'scoped memory for tpu_custom_call.1']
    #allocation4 [shape = 's32[1]{0}', space=sflag, size = 0x4, scoped, tag = 'scoped memory for tpu_custom_call.1']
    #allocation5 [shape = 'u8[32768]{0}', space=vmem, size = 0x8000, scoped, tag = 'input window, operand 1, single buffered']
    #allocation6 [shape = 's32[1]{0}', space=sflag, size = 0x4, scoped, tag = 'scoped memory for tpu_custom_call.1']
    #allocation7 [shape = 'u8[16384]{0}', space=vmem, size = 0x4000, scoped, tag = 'output window, operand 0, single buffered']
    %10 = vsyncpa [#allocation3], 0
    %11 = vsyncpa [#allocation6], 0
    %12 = vsyncpa [#allocation4], 0
    // Predicated region
    $region2: #{tpu_custom_call.1} parent=1 // pred_check
      _
    $region3: #{tpu_custom_call.1} parent=1 // pred_check_branch
      %14 = sbr.rel (0) target = $region5
    $region4: #{tpu_custom_call.1} parent=1 // pred_region
      %s16 = ssub.s32 512, 512
      %17 = vsyncadd [#allocation3], %s16
      %s18 = sshll.u32 [#allocation2], 4
      %s19 = int_to_ptr.vmem [resolvable:$true] %s18
      %24 = dma.hbm_to_vmem [thread:$0]  %s0, 512, %s19, [#allocation3], 128, 128, 8
    $region5: #{tpu_custom_call.1} parent=1 // pred_fallthru
      _
    // Predicated region
    $region6: #{tpu_custom_call.1} parent=1 // pred_check
      _
    $region7: #{tpu_custom_call.1} parent=1 // pred_check_branch
      %26 = sbr.rel (0) target = $region9
    $region8: #{tpu_custom_call.1} parent=1 // pred_region
      %s28 = ssub.s32 1024, 1024
      %29 = vsyncadd [#allocation6], %s28
      %s30 = sshll.u32 [#allocation5], 4
      %s31 = int_to_ptr.vmem [resolvable:$true] %s30
      %36 = dma.hbm_to_vmem [thread:$0]  %s1, 1024, %s31, [#allocation6], 128, 128, 8
    $region9: #{tpu_custom_call.1} parent=1 // pred_fallthru
      _
    // Predicated region
    $region10: #{tpu_custom_call.1} parent=1 // pred_check
      _
    $region11: #{tpu_custom_call.1} parent=1 // pred_check_branch
      %38 = sbr.rel (0) target = $region13
    $region12: #{tpu_custom_call.1} parent=1 // pred_region
      _
    $region13: #{tpu_custom_call.1} parent=1 // pred_fallthru
      _
    // Predicated region
    $region14: #{tpu_custom_call.1} parent=1 // pred_check
      _
    $region15: #{tpu_custom_call.1} parent=1 // pred_check_branch
      %40 = sbr.rel (0) target = $region17
    $region16: #{tpu_custom_call.1} parent=1 // pred_region
      _
    $region17: #{tpu_custom_call.1} parent=1 // pred_fallthru
      _
    // Predicated region
    $region18: #{tpu_custom_call.1} parent=1 // pred_check
      _
    $region19: #{tpu_custom_call.1} parent=1 // pred_check_branch
      %42 = sbr.rel (0) target = $region21
    $region20: #{tpu_custom_call.1} parent=1 // pred_region
      _
    $region21: #{tpu_custom_call.1} parent=1 // pred_fallthru
      _
    // Predicated region
    $region22: #{tpu_custom_call.1} parent=1 // pred_check
      _
    $region23: #{tpu_custom_call.1} parent=1 // pred_check_branch
      %44 = sbr.rel (0) target = $region25
    $region24: #{tpu_custom_call.1} parent=1 // pred_region
      %45 = dma.done [#allocation3], 512
    $region25: #{tpu_custom_call.1} parent=1 // pred_fallthru
      _
    // Predicated region
    $region26: #{tpu_custom_call.1} parent=1 // pred_check
      _
    $region27: #{tpu_custom_call.1} parent=1 // pred_check_branch
      %47 = sbr.rel (0) target = $region29
    $region28: #{tpu_custom_call.1} parent=1 // pred_region
      %48 = dma.done [#allocation6], 1024
    $region29: #{tpu_custom_call.1} parent=1 // pred_fallthru
      _
    %v49 = vld [vmem:[#allocation2] sm:$0xff]
    %v50 = vld [vmem:[#allocation2 + $0x8] sm:$0xff]
    %v51 = vld [vmem:[#allocation2 + $0x10] sm:$0xff]
    %v52 = vld [vmem:[#allocation2 + $0x18] sm:$0xff]
    %v53 = vld [vmem:[#allocation5] sm:$0xff]
    %v54 = vld [vmem:[#allocation5 + $0x8] sm:$0xff]
    %v55 = vld [vmem:[#allocation5 + $0x10] sm:$0xff]
    %v56 = vld [vmem:[#allocation5 + $0x18] sm:$0xff]
    %v57 = vld [vmem:[#allocation5 + $0x20] sm:$0xff]
    %v58 = vld [vmem:[#allocation5 + $0x28] sm:$0xff]
    %v59 = vld [vmem:[#allocation5 + $0x30] sm:$0xff]
    %v60 = vld [vmem:[#allocation5 + $0x38] sm:$0xff]
    %v61 = vld [vmem:[%s2] sm:$0x1]
    %v63 = vlaneseq
    %v64 = vshrl.u32 %v63, 7
    %v65 = vsub.s32 0, %v64
    %v66 = vrot.slane %v61, %v65
    %vm68 = vcmask 523264
    %v70 = vsel %vm68, %v49, 0
    %v73 = vsel %vm68, %v50, 0
    %v76 = vsel %vm68, %v51, 0
    %v79 = vsel %vm68, %v52, 0
    %81 = vmatprep.subr.mxu0 0.0
    %82 = vmatpush1.msra.mxu0 0.0
    %83 = vmatprep.subr.mxu0 0.0
    %84 = vmatpush1.msra.mxu0 0.0
    %85 = vmatprep.subr.mxu0 0.0
    %86 = vmatpush1.msra.mxu0 0.0
    %87 = vmatprep.subr.mxu0 0.0
    %88 = vmatpush1.msra.mxu0 0.0
    %89 = vmatprep.subr.mxu0 0.0
    %90 = vmatpush1.msra.mxu0 0.0
    %91 = vmatprep.subr.mxu0 0.0
    %92 = vmatpush1.msra.mxu0 0.0
    %93 = vmatprep.subr.mxu0 0.0
    %94 = vmatpush1.msra.mxu0 0.0
    %95 = vmatprep.subr.mxu0 0.0
    %96 = vmatpush1.msra.mxu0 0.0
    %97 = vmatprep.subr.mxu0 0.0
    %98 = vmatpush1.msra.mxu0 %v60
    %99 = vmatprep.subr.mxu0 0.0
    %100 = vmatpush1.msra.mxu0 %v59
    %101 = vmatprep.subr.mxu0 0.0
    %102 = vmatpush1.msra.mxu0 %v58
    %103 = vmatprep.subr.mxu0 0.0
    %104 = vmatpush1.msra.mxu0 %v57
    %105 = vmatprep.subr.mxu0 0.0
    %106 = vmatpush1.msra.mxu0 %v56
    %107 = vmatprep.subr.mxu0 0.0
    %108 = vmatpush1.msra.mxu0 %v55
    %109 = vmatprep.subr.mxu0 0.0
    %110 = vmatpush1.msra.mxu0 %v54
    %111 = vmatprep.subr.mxu0 0.0
    %112 = vmatpush1.msra.mxu0 %v53
    %113 = vmatprep.subr.mxu0 0.0
    %114 = vmatpush2.msra.mxu0 0.0
    %115 = vmatprep.subr.mxu0 0.0
    %116 = vmatpush2.msra.mxu0 0.0
    %117 = vmatprep.subr.mxu0 0.0
    %118 = vmatpush2.msra.mxu0 0.0
    %119 = vmatprep.subr.mxu0 0.0
    %120 = vmatpush2.msra.mxu0 0.0
    %121 = vmatprep.subr.mxu0 0.0
    %122 = vmatpush2.msra.mxu0 0.0
    %123 = vmatprep.subr.mxu0 0.0
    %124 = vmatpush2.msra.mxu0 0.0
    %125 = vmatprep.subr.mxu0 0.0
    %126 = vmatpush2.msra.mxu0 0.0
    %127 = vmatprep.subr.mxu0 0.0
    %128 = vmatpush2.msra.mxu0 0.0
    %129 = vmatprep.subr.mxu0 0.0
    %130 = vmatpush2.msra.mxu0 0.0
    %131 = vmatprep.subr.mxu0 0.0
    %132 = vmatpush2.msra.mxu0 0.0
    %133 = vmatprep.subr.mxu0 0.0
    %134 = vmatpush2.msra.mxu0 0.0
    %135 = vmatprep.subr.mxu0 0.0
    %136 = vmatpush2.msra.mxu0 0.0
    %137 = vmatprep.subr.mxu0 0.0
    %138 = vmatpush2.msra.mxu0 0.0
    %139 = vmatprep.subr.mxu0 0.0
    %140 = vmatpush2.msra.mxu0 0.0
    %141 = vmatprep.subr.mxu0 0.0
    %142 = vmatpush2.msra.mxu0 0.0
    %143 = vmatprep.subr.mxu0 0.0
    %144 = vmatpush2.msra.mxu0 0.0
    %145 = vmatprep.mubr.f32.mxu0 0.0
    %146 = vmatmul.mubr.f32.gmra.mxu0 %v70
    %v147 = vpop.f32.mrf.mxu0
    %v148 = vadd.f32 %v66, %v147
    %v149 = vpop.f32.mrf.mxu0
    %150 = vmatprep.mubr.f32.mxu0 0.0
    %151 = vmatmul.mubr.f32.gmra.mxu0 %v73
    %v152 = vpop.f32.mrf.mxu0
    %v153 = vadd.f32 %v66, %v152
    %v154 = vpop.f32.mrf.mxu0
    %155 = vmatprep.mubr.f32.mxu0 0.0
    %156 = vmatmul.mubr.f32.gmra.mxu0 %v76
    %v157 = vpop.f32.mrf.mxu0
    %v158 = vadd.f32 %v66, %v157
    %v159 = vpop.f32.mrf.mxu0
    %160 = vmatprep.mubr.f32.mxu0 0.0
    %161 = vmatmul.mubr.f32.gmra.mxu0 %v79
    %v162 = vpop.f32.mrf.mxu0
    %v163 = vadd.f32 %v66, %v162
    %v164 = vpop.f32.mrf.mxu0
    %165 = vdwg.mxu0
    %v166 = vmax.f32 %v148, 0.0
    %v167 = vmax.f32 %v153, 0.0
    %v168 = vmax.f32 %v158, 0.0
    %v169 = vmax.f32 %v163, 0.0
    %170 = vadd.xlane.f32.xlu0 %v166
    %v171 = vpop.xlane.xlu0 %170
    %172 = vadd.xlane.f32.xlu0 %v167
    %v173 = vpop.xlane.xlu0 %172
    %174 = vadd.xlane.f32.xlu0 %v168
    %v175 = vpop.xlane.xlu0 %174
    %176 = vadd.xlane.f32.xlu0 %v169
    %v177 = vpop.xlane.xlu0 %176
    %v178 = vrcp.pop 128.0
    %v179 = vmul.f32 %v171, %v178
    %v180 = vmul.f32 %v173, %v178
    %v181 = vmul.f32 %v175, %v178
    %v182 = vmul.f32 %v177, %v178
    %v183 = vsub.f32 %v166, %v179
    %v184 = vsub.f32 %v167, %v180
    %v185 = vsub.f32 %v168, %v181
    %v186 = vsub.f32 %v169, %v182
    %v187 = vmul.f32 %v183, %v183
    %v188 = vmul.f32 %v184, %v184
    %v189 = vmul.f32 %v185, %v185
    %v190 = vmul.f32 %v186, %v186
    %191 = vadd.xlane.f32.xlu0 %v187
    %v192 = vpop.xlane.xlu0 %191
    %193 = vadd.xlane.f32.xlu0 %v188
    %v194 = vpop.xlane.xlu0 %193
    %195 = vadd.xlane.f32.xlu0 %v189
    %v196 = vpop.xlane.xlu0 %195
    %197 = vadd.xlane.f32.xlu0 %v190
    %v198 = vpop.xlane.xlu0 %197
    %v199 = vmul.f32 %v192, %v178
    %v200 = vmul.f32 %v194, %v178
    %v201 = vmul.f32 %v196, %v178
    %v202 = vmul.f32 %v198, %v178
    %v203 = vadd.f32 %v199, 1e-05
    %v204 = vadd.f32 %v200, 1e-05
    %v205 = vadd.f32 %v201, 1e-05
    %v206 = vadd.f32 %v202, 1e-05
    %v207 = vrsqrt.pop %v203
    %v208 = vrsqrt.pop %v204
    %v209 = vrsqrt.pop %v205
    %v210 = vrsqrt.pop %v206
    %v211 = vmul.f32 %v183, %v207
    %v212 = vmul.f32 %v184, %v208
    %v213 = vmul.f32 %v185, %v209
    %v214 = vmul.f32 %v186, %v210
    %v215 = vld [vmem:[%s3] sm:$0x1]
    %v217 = vlaneseq
    %v218 = vshrl.u32 %v217, 7
    %v219 = vsub.s32 0, %v218
    %v220 = vrot.slane %v215, %v219
    %v222 = vmul.f32 %v211, %v220
    %v223 = vmul.f32 %v212, %v220
    %v224 = vmul.f32 %v213, %v220
    %v225 = vmul.f32 %v214, %v220
    %v226 = vld [vmem:[%s4] sm:$0x1]
    %v228 = vlaneseq
    %v229 = vshrl.u32 %v228, 7
    %v230 = vsub.s32 0, %v229
    %v231 = vrot.slane %v226, %v230
    %v233 = vadd.f32 %v222, %v231
    %v234 = vadd.f32 %v223, %v231
    %v235 = vadd.f32 %v224, %v231
    %v236 = vadd.f32 %v225, %v231
    %237 = vst [vmem:[#allocation7] sm:$0xff] %v233
    %238 = vst [vmem:[#allocation7 + $0x8] sm:$0xff] %v234
    %239 = vst [vmem:[#allocation7 + $0x10] sm:$0xff] %v235
    %240 = vst [vmem:[#allocation7 + $0x18] sm:$0xff] %v236
    // Predicated region
    $region30: #{tpu_custom_call.1} parent=1 // pred_check
      _
    $region31: #{tpu_custom_call.1} parent=1 // pred_check_branch
      %242 = sbr.rel (0) target = $region33
    $region32: #{tpu_custom_call.1} parent=1 // pred_region
      %s244 = ssub.s32 512, 512
      %245 = vsyncadd [#allocation4], %s244
      %s246 = sshll.u32 [#allocation7], 4
      %s247 = int_to_ptr.vmem [resolvable:$true] %s246
      %252 = dma.vmem_to_hbm [thread:$0]  %s247, 512, %s5, [#allocation4], 128, 128, 8
    $region33: #{tpu_custom_call.1} parent=1 // pred_fallthru
      _
    // Predicated region
    $region34: #{tpu_custom_call.1} parent=1 // pred_check
      _
    $region35: #{tpu_custom_call.1} parent=1 // pred_check_branch
      %254 = sbr.rel (0) target = $region37
    $region36: #{tpu_custom_call.1} parent=1 // pred_region
      %255 = dma.done [#allocation4], 512
    $region37: #{tpu_custom_call.1} parent=1 // pred_fallthru
      _
    %256 = vsyncpa [#allocation3], 1
    %257 = vsyncpa [#allocation6], 1
    %258 = vsyncpa [#allocation4], 1

</llo_original>
